<compile_context>
chip_gen: v6e
topology: v6e:2x2x1
jax: 0.10.0
libtpu: 0.0.40
codegen_flags: <defaults>
</compile_context>

<pallas_src>
import math
import functools

import jax
import jax.numpy as jnp
from jax.experimental import pallas as pl
from jax.experimental.pallas import tpu as pltpu


def _round_up(v, m):
    return (v + m - 1) // m * m


def _pick_batch_tile(b8):
    """Sublane-aligned batch tile.

    Cap at 512 (fills the 256-wide v6e/v7x MXU, amortizes per-step overhead)
    while keeping >= 2 grid steps for larger batches so the "parallel" batch
    axis can use both v7x TensorCores.
    """
    return min(512, _round_up(-(-b8 // 2), 8))


def _default_vmem_limit():
    """~(physical VMEM - 16 MiB), clamped to 112 MiB; safe 48 MiB fallback."""
    try:
        info = pltpu.get_tpu_info()
        for name in ("vmem_capacity_bytes", "vmem_size_bytes", "vmem_bytes"):
            cap = getattr(info, name, None)
            if cap:
                return int(min(cap - (16 << 20), 112 << 20))
    except Exception:
        pass
    return 48 << 20


_VMEM_LIMIT = _default_vmem_limit()


# ---------------------------------------------------------------------------
# Kernel
# ---------------------------------------------------------------------------
def tlstm_kernel(x_ref, h_ref, t_ref, c_ref,
                 wx_ref, wh_ref, bxh_ref, wc_ref, bc_ref,
                 h_out_ref, c_out_ref):
    """One batch-tile of the time-aware LSTM cell.

    x_ref   : (bt, Ip)     input features, zero padded, Ip % 128 == 0
    h_ref   : (bt, Hp)     previous hidden state, Hp % 128 == 0
    t_ref   : (bt, 1)      elapsed-time feature
    c_ref   : (bt, Hp)     previous cell state
    wx_ref  : (Ip, 4*Hp)   x2h weight   (f/i/o cols pre-scaled 0.5)
    wh_ref  : (Hp, 4*Hp)   h2h weight   (f/i/o cols pre-scaled 0.5)
    bxh_ref : (1, 4*Hp)    fused bias bx + bh (f/i/o cols pre-scaled 0.5), f32
    wc_ref  : (Hp, Hp)     c2h weight
    bc_ref  : (1, Hp)      c2h bias, f32
    """
    Hp = c_ref.shape[1]
    wdt = wx_ref.dtype  # weight dtype: f32 or bf16 (MXU operand dtype)

    c_prev = c_ref[...].astype(jnp.float32)

    # Two MXU dots (x-path + h-path) for all four gates.  Operands are cast to
    # the weight dtype so the bf16 path issues native bf16 matmuls; results
    # accumulate in f32.
    pre = (jnp.dot(x_ref[...].astype(wdt), wx_ref[...],
                   preferred_element_type=jnp.float32)
           + jnp.dot(h_ref[...].astype(wdt), wh_ref[...],
                     preferred_element_type=jnp.float32)
           + bxh_ref[...].astype(jnp.float32))

    # f/i/o weight columns + bias were scaled by 0.5 at prepare time, so
    #   sigmoid(g) == 0.5 * tanh(g/2) + 0.5 == 0.5 * tanh(pre) + 0.5
    # -> one EUP tanh pass over the whole (bt, 4*Hp) gate slab.
    z = jnp.tanh(pre)
    f_t = 0.5 * z[:, 0 * Hp:1 * Hp] + 0.5
    i_t = 0.5 * z[:, 1 * Hp:2 * Hp] + 0.5
    o_t = 0.5 * z[:, 2 * Hp:3 * Hp] + 0.5
    c_cur = z[:, 3 * Hp:4 * Hp]

    # c_s_{t-1} = tanh(c2h(c_{t-1}))  -- dot operand in weight dtype only;
    # the element-wise path keeps the f32 c_prev.
    c_s = jnp.tanh(jnp.dot(c_prev.astype(wdt), wc_ref[...],
                           preferred_element_type=jnp.float32)
                   + bc_ref[...].astype(jnp.float32))

    # Time-decay mixing; data_t is (bt, 1) and lane-broadcasts over Hp.
    c_s_hat = c_s * jnp.tanh(t_ref[...].astype(jnp.float32))
    c_star = (c_prev - c_s) + c_s_hat

    c_t = f_t * c_star + i_t * c_cur
    h_t = o_t * jnp.tanh(c_t)

    h_out_ref[...] = h_t.astype(h_out_ref.dtype)
    c_out_ref[...] = c_t.astype(c_out_ref.dtype)


# ---------------------------------------------------------------------------
# Wrapper
# ---------------------------------------------------------------------------
@jax.jit
def tlstm_cell_forward(x, t, h_prev, c_prev, w_x, w_h, b_xh, w_c, b_c):
    """x:(B,I) t:(B,1) h_prev/c_prev:(B,H); padded params from prepare_params."""
    B, I = x.shape
    H = h_prev.shape[1]
    Hp = w_c.shape[0]
    Ip = w_x.shape[0]

    B8 = _round_up(B, 8)
    bt = _pick_batch_tile(B8)
    Bp = _round_up(B8, bt)

    x_p = jnp.pad(x, ((0, Bp - B), (0, Ip - I)))
    h_p = jnp.pad(h_prev, ((0, Bp - B), (0, Hp - H)))
    c_p = jnp.pad(c_prev, ((0, Bp - B), (0, Hp - H)))
    t_p = jnp.pad(t, ((0, Bp - B), (0, 0)))

    grid = (Bp // bt,)
    out_shape = (jax.ShapeDtypeStruct((Bp, Hp), x.dtype),
                 jax.ShapeDtypeStruct((Bp, Hp), x.dtype))

    # Grid-invariant operands (constant index_map): single-buffered so they
    # cost one copy of VMEM instead of two.
    resident = functools.partial(pl.BlockSpec, pipeline_mode=pl.Buffered(1))

    # NOTE: weights are kept whole-array resident in VMEM.  For very large H
    # add K/N tiling over the 4*Hp axis; when driven in a time-scan, also
    # alias h/c in-out and hoist the X @ Wx projection out of the loop.
    h_pad, c_pad = pl.pallas_call(
        tlstm_kernel,
        out_shape=out_shape,
        grid_spec=pltpu.PrefetchScalarGridSpec(
            num_scalar_prefetch=0,
            grid=grid,
            in_specs=[
                pl.BlockSpec((bt, Ip), lambda i: (i, 0)),          # x
                pl.BlockSpec((bt, Hp), lambda i: (i, 0)),          # h_prev
                pl.BlockSpec((bt, 1), lambda i: (i, 0)),           # t
                pl.BlockSpec((bt, Hp), lambda i: (i, 0)),          # c_prev
                resident((Ip, 4 * Hp), lambda i: (0, 0)),          # w_x
                resident((Hp, 4 * Hp), lambda i: (0, 0)),          # w_h
                resident((1, 4 * Hp), lambda i: (0, 0)),           # b_xh
                resident((Hp, Hp), lambda i: (0, 0)),              # w_c
                resident((1, Hp), lambda i: (0, 0)),               # b_c
            ],
            out_specs=(
                pl.BlockSpec((bt, Hp), lambda i: (i, 0)),          # h_t
                pl.BlockSpec((bt, Hp), lambda i: (i, 0)),          # c_t
            ),
        ),
        compiler_params=pltpu.CompilerParams(
            dimension_semantics=("parallel",),
            vmem_limit_bytes=_VMEM_LIMIT,
        ),
    )(x_p, h_p, t_p, c_p, w_x, w_h, b_xh, w_c, b_c)

    return h_pad[:B, :H], c_pad[:B, :H]


# ---------------------------------------------------------------------------
# Parameters
# ---------------------------------------------------------------------------
def init_params(key, input_size, hidden_size, dtype=jnp.float32):
    """Mimic tLSTMCell.reset_parameters(): uniform(-std, std), std=1/sqrt(H).

    Weights are stored pre-transposed ((in, out)) so the kernel does x @ W.
    """
    std = 1.0 / math.sqrt(hidden_size)
    ks = jax.random.split(key, 6)
    u = lambda k, shape: jax.random.uniform(k, shape, dtype, minval=-std, maxval=std)
    wx = u(ks[0], (input_size, 4 * hidden_size))   # x2h weight
    bx = u(ks[1], (1, 4 * hidden_size))            # x2h bias
    wh = u(ks[2], (hidden_size, 4 * hidden_size))  # h2h weight
    bh = u(ks[3], (1, 4 * hidden_size))            # h2h bias
    wc = u(ks[4], (hidden_size, hidden_size))      # c2h weight
    bc = u(ks[5], (1, hidden_size))                # c2h bias
    return wx, bx, wh, bh, wc, bc


def prepare_params(wx, bx, wh, bh, wc, bc, weight_dtype=jnp.float32):
    """Pad + fuse raw tLSTM parameters for the Pallas kernel (one-time cost).

    * Each gate block, the hidden dim and the input dim are zero-padded to
      multiples of 128 (lane-dense slices, unmasked stores).
    * x2h/h2h biases fused into one f32 bias (bx + bh).
    * f/i/o gate columns pre-scaled by 0.5 so the kernel evaluates all four
      gate activations with a single tanh pass (exact sigmoid identity).
    * weight_dtype=jnp.bfloat16 halves HBM weight bytes AND enables the native
      bf16 MXU path (the kernel casts the dot operands to the weight dtype);
      biases always stay f32.
    """
    I = wx.shape[0]
    H = wh.shape[0]
    Hp = _round_up(H, 128)
    Ip = _round_up(I, 128)
    f32 = jnp.float32

    def pad_gate_weight(w, k_in, k_pad):
        w4 = w.astype(f32).reshape(k_in, 4, H)
        w4 = jnp.pad(w4, ((0, k_pad - k_in), (0, 0), (0, Hp - H)))
        return w4.reshape(k_pad, 4 * Hp)

    w_x = pad_gate_weight(wx, I, Ip)                               # (Ip, 4Hp)
    w_h = pad_gate_weight(wh, H, Hp)                               # (Hp, 4Hp)
    b4 = (bx.astype(f32) + bh.astype(f32)).reshape(4, H)
    b_xh = jnp.pad(b4, ((0, 0), (0, Hp - H))).reshape(1, 4 * Hp)

    # Fold the sigmoid-as-tanh rescale into the f/i/o gate columns (exact: 0.5).
    scale = jnp.concatenate([jnp.full((3 * Hp,), 0.5, f32),
                             jnp.ones((Hp,), f32)]).reshape(1, 4 * Hp)
    w_x = w_x * scale
    w_h = w_h * scale
    b_xh = b_xh * scale

    w_c = jnp.pad(wc.astype(f32), ((0, Hp - H), (0, Hp - H)))
    b_c = jnp.pad(bc.astype(f32), ((0, 0), (0, Hp - H)))

    return (w_x.astype(weight_dtype), w_h.astype(weight_dtype),
            b_xh, w_c.astype(weight_dtype), b_c)


# ---------------------------------------------------------------------------
# Pure-JAX reference (matches the PyTorch module)
# ---------------------------------------------------------------------------
def reference_forward(x, t, h_prev, c_prev, wx, bx, wh, bh, wc, bc):
    gates = x @ wx + bx + h_prev @ wh + bh
    _f, _i, _o, _ch = jnp.split(gates, 4, axis=-1)
    f_t = jax.nn.sigmoid(_f)
    i_t = jax.nn.sigmoid(_i)
    o_t = jax.nn.sigmoid(_o)
    c_cur = jnp.tanh(_ch)
    c_s = jnp.tanh(c_prev @ wc + bc)
    c_star = (c_prev - c_s) + c_s * jnp.tanh(t)
    c_t = f_t * c_star + i_t * c_cur
    h_t = o_t * jnp.tanh(c_t)
    return h_t, c_t


if __name__ == "__main__":
    B = 8
    INPUT_SIZE = 32
    HIDDEN_SIZE = 32
    dtype = jnp.float32

    key = jax.random.PRNGKey(0)
    kp, kx, kt, kh, kc = jax.random.split(key, 5)

    raw = init_params(kp, INPUT_SIZE, HIDDEN_SIZE, dtype)

    data_x = jax.random.normal(kx, (B, INPUT_SIZE), dtype)
    data_t = jax.random.uniform(kt, (B, 1), dtype)      # elapsed-time feature
    h_t_1 = jax.random.normal(kh, (B, HIDDEN_SIZE), dtype)
    c_t_1 = jax.random.normal(kc, (B, HIDDEN_SIZE), dtype)

    h_ref, c_ref = reference_forward(data_x, data_t, h_t_1, c_t_1, *raw)

    # f32 weights: exact semantics of the PyTorch module.
    params_f32 = prepare_params(*raw, weight_dtype=jnp.float32)
    h_t, c_t = tlstm_cell_forward(data_x, data_t, h_t_1, c_t_1, *params_f32)
    jax.block_until_ready((h_t, c_t))
    assert jnp.allclose(h_t, h_ref, atol=3e-5, rtol=3e-5), "h mismatch (f32)"
    assert jnp.allclose(c_t, c_ref, atol=3e-5, rtol=3e-5), "c mismatch (f32)"

    # bf16 weights: native bf16 MXU dots (operands cast in-kernel), f32 accum.
    params_bf16 = prepare_params(*raw, weight_dtype=jnp.bfloat16)
    h_b, c_b = tlstm_cell_forward(data_x, data_t, h_t_1, c_t_1, *params_bf16)
    jax.block_until_ready((h_b, c_b))
    assert jnp.allclose(h_b, h_ref, atol=1e-1, rtol=1e-1), "h mismatch (bf16)"
    assert jnp.allclose(c_b, c_ref, atol=1e-1, rtol=1e-1), "c mismatch (bf16)"

    print("KERNEL_OK")
</pallas_src>

<mosaic_0001>
module attributes {stable_mosaic.version = 11 : i64} {
  func.func @tlstm_kernel(%arg0: i32, %arg1: memref<8x128xf32, #tpu.memory_space<vmem>>, %arg2: memref<8x128xf32, #tpu.memory_space<vmem>>, %arg3: memref<8x1xf32, #tpu.memory_space<vmem>>, %arg4: memref<8x128xf32, #tpu.memory_space<vmem>>, %arg5: memref<128x512xf32, #tpu.memory_space<vmem>>, %arg6: memref<128x512xf32, #tpu.memory_space<vmem>>, %arg7: memref<1x512xf32, #tpu.memory_space<vmem>>, %arg8: memref<128x128xf32, #tpu.memory_space<vmem>>, %arg9: memref<1x128xf32, #tpu.memory_space<vmem>>, %arg10: memref<8x128xf32, #tpu.memory_space<vmem>>, %arg11: memref<8x128xf32, #tpu.memory_space<vmem>>) attributes {dimension_semantics = [#tpu.dimension_semantics<parallel>], iteration_bounds = array<i64: 1>, scalar_prefetch = 0 : i64, scratch_operands = 0 : i64, tpu.core_type = #tpu.core_type<tc>, window_params = [{transform_indices = @transform_0, window_bounds = array<i64: 8, 128>}, {transform_indices = @transform_1, window_bounds = array<i64: 8, 128>}, {transform_indices = @transform_2, window_bounds = array<i64: 8, 1>}, {transform_indices = @transform_3, window_bounds = array<i64: 8, 128>}, {pipeline_mode = #tpu.pipeline_mode<synchronous>, transform_indices = @transform_4, window_bounds = array<i64: 128, 512>}, {pipeline_mode = #tpu.pipeline_mode<synchronous>, transform_indices = @transform_5, window_bounds = array<i64: 128, 512>}, {pipeline_mode = #tpu.pipeline_mode<synchronous>, transform_indices = @transform_6, window_bounds = array<i64: 1, 512>}, {pipeline_mode = #tpu.pipeline_mode<synchronous>, transform_indices = @transform_7, window_bounds = array<i64: 128, 128>}, {pipeline_mode = #tpu.pipeline_mode<synchronous>, transform_indices = @transform_8, window_bounds = array<i64: 1, 128>}, {transform_indices = @transform_9, window_bounds = array<i64: 8, 128>}, {transform_indices = @transform_10, window_bounds = array<i64: 8, 128>}]} {
    %c0 = arith.constant 0 : index
    %c0_0 = arith.constant 0 : index
    %0 = vector.load %arg4[%c0, %c0_0] : memref<8x128xf32, #tpu.memory_space<vmem>>, vector<8x128xf32>
    %c0_1 = arith.constant 0 : index
    %c0_2 = arith.constant 0 : index
    %1 = vector.load %arg1[%c0_1, %c0_2] : memref<8x128xf32, #tpu.memory_space<vmem>>, vector<8x128xf32>
    %c0_3 = arith.constant 0 : index
    %c0_4 = arith.constant 0 : index
    %2 = vector.load %arg5[%c0_3, %c0_4] : memref<128x512xf32, #tpu.memory_space<vmem>>, vector<128x512xf32>
    %cst = arith.constant dense<0.000000e+00> : vector<8x512xf32>
    %3 = tpu.matmul %1, %2, %cst {dimension_numbers = #tpu.dot_dimension_numbers<[1], [0], [0], [1], [0, 0, 1, 1], [], []>} : vector<8x128xf32>, vector<128x512xf32>, vector<8x512xf32> -> vector<8x512xf32>
    %c0_5 = arith.constant 0 : index
    %c0_6 = arith.constant 0 : index
    %4 = vector.load %arg2[%c0_5, %c0_6] : memref<8x128xf32, #tpu.memory_space<vmem>>, vector<8x128xf32>
    %c0_7 = arith.constant 0 : index
    %c0_8 = arith.constant 0 : index
    %5 = vector.load %arg6[%c0_7, %c0_8] : memref<128x512xf32, #tpu.memory_space<vmem>>, vector<128x512xf32>
    %cst_9 = arith.constant dense<0.000000e+00> : vector<8x512xf32>
    %6 = tpu.matmul %4, %5, %cst_9 {dimension_numbers = #tpu.dot_dimension_numbers<[1], [0], [0], [1], [0, 0, 1, 1], [], []>} : vector<8x128xf32>, vector<128x512xf32>, vector<8x512xf32> -> vector<8x512xf32>
    %7 = arith.addf %3, %6 : vector<8x512xf32>
    %c0_10 = arith.constant 0 : index
    %c0_11 = arith.constant 0 : index
    %8 = vector.load %arg7[%c0_10, %c0_11] : memref<1x512xf32, #tpu.memory_space<vmem>>, vector<1x512xf32>
    %9 = vector.broadcast %8 : vector<1x512xf32> to vector<8x512xf32>
    %10 = arith.addf %7, %9 : vector<8x512xf32>
    %11 = math.tanh %10 : vector<8x512xf32>
    %12 = vector.extract_strided_slice %11 {offsets = [0, 0], sizes = [8, 128], strides = [1, 1]} : vector<8x512xf32> to vector<8x128xf32>
    %cst_12 = arith.constant 5.000000e-01 : f32
    %13 = vector.broadcast %cst_12 : f32 to vector<8x128xf32>
    %14 = arith.mulf %13, %12 : vector<8x128xf32>
    %cst_13 = arith.constant 5.000000e-01 : f32
    %15 = vector.broadcast %cst_13 : f32 to vector<8x128xf32>
    %16 = arith.addf %14, %15 : vector<8x128xf32>
    %17 = vector.extract_strided_slice %11 {offsets = [0, 128], sizes = [8, 128], strides = [1, 1]} : vector<8x512xf32> to vector<8x128xf32>
    %cst_14 = arith.constant 5.000000e-01 : f32
    %18 = vector.broadcast %cst_14 : f32 to vector<8x128xf32>
    %19 = arith.mulf %18, %17 : vector<8x128xf32>
    %cst_15 = arith.constant 5.000000e-01 : f32
    %20 = vector.broadcast %cst_15 : f32 to vector<8x128xf32>
    %21 = arith.addf %19, %20 : vector<8x128xf32>
    %22 = vector.extract_strided_slice %11 {offsets = [0, 256], sizes = [8, 128], strides = [1, 1]} : vector<8x512xf32> to vector<8x128xf32>
    %cst_16 = arith.constant 5.000000e-01 : f32
    %23 = vector.broadcast %cst_16 : f32 to vector<8x128xf32>
    %24 = arith.mulf %23, %22 : vector<8x128xf32>
    %cst_17 = arith.constant 5.000000e-01 : f32
    %25 = vector.broadcast %cst_17 : f32 to vector<8x128xf32>
    %26 = arith.addf %24, %25 : vector<8x128xf32>
    %27 = vector.extract_strided_slice %11 {offsets = [0, 384], sizes = [8, 128], strides = [1, 1]} : vector<8x512xf32> to vector<8x128xf32>
    %c0_18 = arith.constant 0 : index
    %c0_19 = arith.constant 0 : index
    %28 = vector.load %arg8[%c0_18, %c0_19] : memref<128x128xf32, #tpu.memory_space<vmem>>, vector<128x128xf32>
    %cst_20 = arith.constant dense<0.000000e+00> : vector<8x128xf32>
    %29 = tpu.matmul %0, %28, %cst_20 {dimension_numbers = #tpu.dot_dimension_numbers<[1], [0], [0], [1], [0, 0, 1, 1], [], []>} : vector<8x128xf32>, vector<128x128xf32>, vector<8x128xf32> -> vector<8x128xf32>
    %c0_21 = arith.constant 0 : index
    %c0_22 = arith.constant 0 : index
    %30 = vector.load %arg9[%c0_21, %c0_22] : memref<1x128xf32, #tpu.memory_space<vmem>>, vector<1x128xf32>
    %31 = vector.broadcast %30 : vector<1x128xf32> to vector<8x128xf32>
    %32 = arith.addf %29, %31 : vector<8x128xf32>
    %33 = math.tanh %32 : vector<8x128xf32>
    %c0_23 = arith.constant 0 : index
    %c0_24 = arith.constant 0 : index
    %34 = vector.load %arg3[%c0_23, %c0_24] : memref<8x1xf32, #tpu.memory_space<vmem>>, vector<8x1xf32>
    %35 = math.tanh %34 : vector<8x1xf32>
    %36 = vector.broadcast %35 : vector<8x1xf32> to vector<8x128xf32>
    %37 = arith.mulf %33, %36 : vector<8x128xf32>
    %38 = arith.subf %0, %33 : vector<8x128xf32>
    %39 = arith.addf %38, %37 : vector<8x128xf32>
    %40 = arith.mulf %16, %39 : vector<8x128xf32>
    %41 = arith.mulf %21, %27 : vector<8x128xf32>
    %42 = arith.addf %40, %41 : vector<8x128xf32>
    %43 = math.tanh %42 : vector<8x128xf32>
    %44 = arith.mulf %26, %43 : vector<8x128xf32>
    %c0_25 = arith.constant 0 : index
    %c0_26 = arith.constant 0 : index
    %45 = vector.load %arg10[%c0_25, %c0_26] : memref<8x128xf32, #tpu.memory_space<vmem>>, vector<8x128xf32>
    tpu.vector_store %arg10[%c0_25, %c0_26], %44 {strides = array<i32>} : memref<8x128xf32, #tpu.memory_space<vmem>>, vector<8x128xf32>,
    %c0_27 = arith.constant 0 : index
    %c0_28 = arith.constant 0 : index
    %46 = vector.load %arg11[%c0_27, %c0_28] : memref<8x128xf32, #tpu.memory_space<vmem>>, vector<8x128xf32>
    tpu.vector_store %arg11[%c0_27, %c0_28], %42 {strides = array<i32>} : memref<8x128xf32, #tpu.memory_space<vmem>>, vector<8x128xf32>,
    return
  }
  func.func @transform_0(%arg0: i32) -> (i32, i32) {
    %c0_i32 = arith.constant 0 : i32
    %c0_i32_0 = arith.constant 0 : i32
    return %arg0, %c0_i32 : i32, i32
  }
  func.func @transform_1(%arg0: i32) -> (i32, i32) {
    %c0_i32 = arith.constant 0 : i32
    %c0_i32_0 = arith.constant 0 : i32
    return %arg0, %c0_i32 : i32, i32
  }
  func.func @transform_2(%arg0: i32) -> (i32, i32) {
    %c0_i32 = arith.constant 0 : i32
    %c0_i32_0 = arith.constant 0 : i32
    return %arg0, %c0_i32 : i32, i32
  }
  func.func @transform_3(%arg0: i32) -> (i32, i32) {
    %c0_i32 = arith.constant 0 : i32
    %c0_i32_0 = arith.constant 0 : i32
    return %arg0, %c0_i32 : i32, i32
  }
  func.func @transform_4(%arg0: i32) -> (i32, i32) {
    %c0_i32 = arith.constant 0 : i32
    %c0_i32_0 = arith.constant 0 : i32
    %c0_i32_1 = arith.constant 0 : i32
    return %c0_i32, %c0_i32_0 : i32, i32
  }
  func.func @transform_5(%arg0: i32) -> (i32, i32) {
    %c0_i32 = arith.constant 0 : i32
    %c0_i32_0 = arith.constant 0 : i32
    %c0_i32_1 = arith.constant 0 : i32
    return %c0_i32, %c0_i32_0 : i32, i32
  }
  func.func @transform_6(%arg0: i32) -> (i32, i32) {
    %c0_i32 = arith.constant 0 : i32
    %c0_i32_0 = arith.constant 0 : i32
    %c0_i32_1 = arith.constant 0 : i32
    return %c0_i32, %c0_i32_0 : i32, i32
  }
  func.func @transform_7(%arg0: i32) -> (i32, i32) {
    %c0_i32 = arith.constant 0 : i32
    %c0_i32_0 = arith.constant 0 : i32
    %c0_i32_1 = arith.constant 0 : i32
    return %c0_i32, %c0_i32_0 : i32, i32
  }
  func.func @transform_8(%arg0: i32) -> (i32, i32) {
    %c0_i32 = arith.constant 0 : i32
    %c0_i32_0 = arith.constant 0 : i32
    %c0_i32_1 = arith.constant 0 : i32
    return %c0_i32, %c0_i32_0 : i32, i32
  }
  func.func @transform_9(%arg0: i32) -> (i32, i32) {
    %c0_i32 = arith.constant 0 : i32
    %c0_i32_0 = arith.constant 0 : i32
    return %arg0, %c0_i32 : i32, i32
  }
  func.func @transform_10(%arg0: i32) -> (i32, i32) {
    %c0_i32 = arith.constant 0 : i32
    %c0_i32_0 = arith.constant 0 : i32
    return %arg0, %c0_i32 : i32, i32
  }
}

</mosaic_0001>

<llo_original>
// kernel: tlstm_cell_forward.1
$region0: #{tlstm_cell_forward.1}
  #allocation0 [shape = 'u32[]', space=smem, size = 0x4, offset = 0x4, fixed_abs, tag = 'smem constant byte address 0x4 - core index']
  #allocation1 [shape = 'u32[144,128]{1,0:T(1,128)}', space=vmem, size = 0x12000, scoped, tag = 'internal scratch']
  %s0 = inlined_call_operand.vmem [shape: f32[8,128], index: 0, kind: input, shape index: {}]
  %s1 = inlined_call_operand.vmem [shape: f32[8,128], index: 1, kind: input, shape index: {}]
  %s2 = inlined_call_operand.vmem [shape: f32[8,1], index: 2, kind: input, shape index: {}]
  %s3 = inlined_call_operand.vmem [shape: f32[8,128], index: 3, kind: input, shape index: {}]
  %s4 = inlined_call_operand.hbm [shape: f32[128,512], index: 4, kind: input, shape index: {}]
  %s5 = inlined_call_operand.hbm [shape: f32[128,512], index: 5, kind: input, shape index: {}]
  %s6 = inlined_call_operand.vmem [shape: f32[1,512], index: 6, kind: input, shape index: {}]
  %s7 = inlined_call_operand.hbm [shape: f32[128,128], index: 7, kind: input, shape index: {}]
  %s8 = inlined_call_operand.vmem [shape: f32[1,128], index: 8, kind: input, shape index: {}]
  %s9 = inlined_call_operand.hbm [shape: f32[8,128], index: 9, kind: output, shape index: {0}]
  %s10 = inlined_call_operand.hbm [shape: f32[8,128], index: 10, kind: output, shape index: {1}]
  %11 = xla_tuple %s9, %s10
  %s12 = sld [smem:[#allocation0]]
  $region66: #{tlstm_cell_forward.1} parent=0
    _
  %s14 = ssub.s32 1, %s12
  %s15 = scalar_select 0, %s14, %s12
  $region1: #{tlstm_cell_forward.1} parent=0
    #allocation2 [shape = 'u8[262144]{0}', space=vmem, size = 0x40000, scoped, tag = 'input window, operand 4, single buffered']
    #allocation3 [shape = 's32[1]{0}', space=sflag, size = 0x4, scoped, tag = 'scoped memory for tlstm_cell_forward.1']
    #allocation4 [shape = 's32[1]{0}', space=sflag, size = 0x4, scoped, tag = 'scoped memory for tlstm_cell_forward.1']
    #allocation5 [shape = 'u8[262144]{0}', space=vmem, size = 0x40000, scoped, tag = 'input window, operand 5, single buffered']
    #allocation6 [shape = 's32[1]{0}', space=sflag, size = 0x4, scoped, tag = 'scoped memory for tlstm_cell_forward.1']
    #allocation7 [shape = 'u8[65536]{0}', space=vmem, size = 0x10000, scoped, tag = 'input window, operand 7, single buffered']
    #allocation8 [shape = 'u8[4096]{0}', space=vmem, size = 0x1000, scoped, tag = 'output window, operand 0, single buffered']
    #allocation9 [shape = 'u8[4096]{0}', space=vmem, size = 0x1000, scoped, tag = 'output window, operand 1, single buffered']
    #allocation10 [shape = 's32[1]{0}', space=sflag, size = 0x4, scoped, tag = 'scoped memory for tlstm_cell_forward.1']
    %16 = vsyncpa [#allocation3], 0
    %17 = vsyncpa [#allocation6], 0
    %18 = vsyncpa [#allocation4], 0
    %19 = vsyncpa [#allocation10], 0
    // Predicated region
    $region2: #{tlstm_cell_forward.1} parent=1 // pred_check
      _
    $region3: #{tlstm_cell_forward.1} parent=1 // pred_check_branch
      %21 = sbr.rel (0) target = $region5
    $region4: #{tlstm_cell_forward.1} parent=1 // pred_region
      _
    $region5: #{tlstm_cell_forward.1} parent=1 // pred_fallthru
      _
    // Predicated region
    $region6: #{tlstm_cell_forward.1} parent=1 // pred_check
      _
    $region7: #{tlstm_cell_forward.1} parent=1 // pred_check_branch
      %23 = sbr.rel (0) target = $region9
    $region8: #{tlstm_cell_forward.1} parent=1 // pred_region
      _
    $region9: #{tlstm_cell_forward.1} parent=1 // pred_fallthru
      _
    // Predicated region
    $region10: #{tlstm_cell_forward.1} parent=1 // pred_check
      _
    $region11: #{tlstm_cell_forward.1} parent=1 // pred_check_branch
      %25 = sbr.rel (0) target = $region13
    $region12: #{tlstm_cell_forward.1} parent=1 // pred_region
      _
    $region13: #{tlstm_cell_forward.1} parent=1 // pred_fallthru
      _
    // Predicated region
    $region14: #{tlstm_cell_forward.1} parent=1 // pred_check
      _
    $region15: #{tlstm_cell_forward.1} parent=1 // pred_check_branch
      %27 = sbr.rel (0) target = $region17
    $region16: #{tlstm_cell_forward.1} parent=1 // pred_region
      _
    $region17: #{tlstm_cell_forward.1} parent=1 // pred_fallthru
      _
    // Predicated region
    $region18: #{tlstm_cell_forward.1} parent=1 // pred_check
      _
    $region19: #{tlstm_cell_forward.1} parent=1 // pred_check_branch
      %29 = sbr.rel (0) target = $region21
    $region20: #{tlstm_cell_forward.1} parent=1 // pred_region
      %s31 = ssub.s32 8192, 8192
      %32 = vsyncadd [#allocation3], %s31
      %s33 = sshll.u32 [#allocation2], 4
      %s34 = int_to_ptr.vmem [resolvable:$true] %s33
      %39 = dma.hbm_to_vmem [thread:$0]  %s4, 8192, %s34, [#allocation3], 512, 512, 32
    $region21: #{tlstm_cell_forward.1} parent=1 // pred_fallthru
      _
    // Predicated region
    $region22: #{tlstm_cell_forward.1} parent=1 // pred_check
      _
    $region23: #{tlstm_cell_forward.1} parent=1 // pred_check_branch
      %41 = sbr.rel (0) target = $region25
    $region24: #{tlstm_cell_forward.1} parent=1 // pred_region
      %s43 = ssub.s32 8192, 8192
      %44 = vsyncadd [#allocation6], %s43
      %s45 = sshll.u32 [#allocation5], 4
      %s46 = int_to_ptr.vmem [resolvable:$true] %s45
      %51 = dma.hbm_to_vmem [thread:$0]  %s5, 8192, %s46, [#allocation6], 512, 512, 32
    $region25: #{tlstm_cell_forward.1} parent=1 // pred_fallthru
      _
    // Predicated region
    $region26: #{tlstm_cell_forward.1} parent=1 // pred_check
      _
    $region27: #{tlstm_cell_forward.1} parent=1 // pred_check_branch
      %53 = sbr.rel (0) target = $region29
    $region28: #{tlstm_cell_forward.1} parent=1 // pred_region
      _
    $region29: #{tlstm_cell_forward.1} parent=1 // pred_fallthru
      _
    // Predicated region
    $region30: #{tlstm_cell_forward.1} parent=1 // pred_check
      _
    $region31: #{tlstm_cell_forward.1} parent=1 // pred_check_branch
      %55 = sbr.rel (0) target = $region33
    $region32: #{tlstm_cell_forward.1} parent=1 // pred_region
      %s57 = ssub.s32 2048, 2048
      %58 = vsyncadd [#allocation6], %s57
      %s59 = sshll.u32 [#allocation7], 4
      %s60 = int_to_ptr.vmem [resolvable:$true] %s59
      %65 = dma.hbm_to_vmem [thread:$0]  %s7, 2048, %s60, [#allocation6], 128, 128, 8
    $region33: #{tlstm_cell_forward.1} parent=1 // pred_fallthru
      _
    // Predicated region
    $region34: #{tlstm_cell_forward.1} parent=1 // pred_check
      _
    $region35: #{tlstm_cell_forward.1} parent=1 // pred_check_branch
      %67 = sbr.rel (0) target = $region37
    $region36: #{tlstm_cell_forward.1} parent=1 // pred_region
      _
    $region37: #{tlstm_cell_forward.1} parent=1 // pred_fallthru
      _
    // Predicated region
    $region38: #{tlstm_cell_forward.1} parent=1 // pred_check
      _
    $region39: #{tlstm_cell_forward.1} parent=1 // pred_check_branch
      %69 = sbr.rel (0) target = $region41
    $region40: #{tlstm_cell_forward.1} parent=1 // pred_region
      %70 = dma.done [#allocation3], 8192
    $region41: #{tlstm_cell_forward.1} parent=1 // pred_fallthru
      _
    // Predicated region
    $region42: #{tlstm_cell_forward.1} parent=1 // pred_check
      _
    $region43: #{tlstm_cell_forward.1} parent=1 // pred_check_branch
      %72 = sbr.rel (0) target = $region45
    $region44: #{tlstm_cell_forward.1} parent=1 // pred_region
      %73 = dma.done [#allocation6], 8192
    $region45: #{tlstm_cell_forward.1} parent=1 // pred_fallthru
      _
    // Predicated region
    $region46: #{tlstm_cell_forward.1} parent=1 // pred_check
      _
    $region47: #{tlstm_cell_forward.1} parent=1 // pred_check_branch
      %75 = sbr.rel (0) target = $region49
    $region48: #{tlstm_cell_forward.1} parent=1 // pred_region
      %76 = dma.done [#allocation6], 2048
    $region49: #{tlstm_cell_forward.1} parent=1 // pred_fallthru
      _
    %v77 = vld [vmem:[%s3] sm:$0xff]
    %v78 = vld [vmem:[%s0] sm:$0xff]
    %v79 = vld [vmem:[#allocation2] sm:$0xff]
    %v80 = vld [vmem:[#allocation2 + $0x8] sm:$0xff]
    %v81 = vld [vmem:[#allocation2 + $0x10] sm:$0xff]
    %v82 = vld [vmem:[#allocation2 + $0x18] sm:$0xff]
    %v83 = vld [vmem:[#allocation2 + $0x20] sm:$0xff]
    %v84 = vld [vmem:[#allocation2 + $0x28] sm:$0xff]
    %v85 = vld [vmem:[#allocation2 + $0x30] sm:$0xff]
    %v86 = vld [vmem:[#allocation2 + $0x38] sm:$0xff]
    %v87 = vld [vmem:[#allocation2 + $0x40] sm:$0xff]
    %v88 = vld [vmem:[#allocation2 + $0x48] sm:$0xff]
    %v89 = vld [vmem:[#allocation2 + $0x50] sm:$0xff]
    %v90 = vld [vmem:[#allocation2 + $0x58] sm:$0xff]
    %v91 = vld [vmem:[#allocation2 + $0x60] sm:$0xff]
    %v92 = vld [vmem:[#allocation2 + $0x68] sm:$0xff]
    %v93 = vld [vmem:[#allocation2 + $0x70] sm:$0xff]
    %v94 = vld [vmem:[#allocation2 + $0x78] sm:$0xff]
    %v95 = vld [vmem:[#allocation2 + $0x80] sm:$0xff]
    %v96 = vld [vmem:[#allocation2 + $0x88] sm:$0xff]
    %v97 = vld [vmem:[#allocation2 + $0x90] sm:$0xff]
    %v98 = vld [vmem:[#allocation2 + $0x98] sm:$0xff]
    %v99 = vld [vmem:[#allocation2 + $0xa0] sm:$0xff]
    %v100 = vld [vmem:[#allocation2 + $0xa8] sm:$0xff]
    %v101 = vld [vmem:[#allocation2 + $0xb0] sm:$0xff]
    %v102 = vld [vmem:[#allocation2 + $0xb8] sm:$0xff]
    %v103 = vld [vmem:[#allocation2 + $0xc0] sm:$0xff]
    %v104 = vld [vmem:[#allocation2 + $0xc8] sm:$0xff]
    %v105 = vld [vmem:[#allocation2 + $0xd0] sm:$0xff]
    %v106 = vld [vmem:[#allocation2 + $0xd8] sm:$0xff]
    %v107 = vld [vmem:[#allocation2 + $0xe0] sm:$0xff]
    %v108 = vld [vmem:[#allocation2 + $0xe8] sm:$0xff]
    %v109 = vld [vmem:[#allocation2 + $0xf0] sm:$0xff]
    %v110 = vld [vmem:[#allocation2 + $0xf8] sm:$0xff]
    %v111 = vld [vmem:[#allocation2 + $0x100] sm:$0xff]
    %v112 = vld [vmem:[#allocation2 + $0x108] sm:$0xff]
    %v113 = vld [vmem:[#allocation2 + $0x110] sm:$0xff]
    %v114 = vld [vmem:[#allocation2 + $0x118] sm:$0xff]
    %v115 = vld [vmem:[#allocation2 + $0x120] sm:$0xff]
    %v116 = vld [vmem:[#allocation2 + $0x128] sm:$0xff]
    %v117 = vld [vmem:[#allocation2 + $0x130] sm:$0xff]
    %v118 = vld [vmem:[#allocation2 + $0x138] sm:$0xff]
    %v119 = vld [vmem:[#allocation2 + $0x140] sm:$0xff]
    %v120 = vld [vmem:[#allocation2 + $0x148] sm:$0xff]
    %v121 = vld [vmem:[#allocation2 + $0x150] sm:$0xff]
    %v122 = vld [vmem:[#allocation2 + $0x158] sm:$0xff]
    %v123 = vld [vmem:[#allocation2 + $0x160] sm:$0xff]
    %v124 = vld [vmem:[#allocation2 + $0x168] sm:$0xff]
    %v125 = vld [vmem:[#allocation2 + $0x170] sm:$0xff]
    %v126 = vld [vmem:[#allocation2 + $0x178] sm:$0xff]
    %v127 = vld [vmem:[#allocation2 + $0x180] sm:$0xff]
    %v128 = vld [vmem:[#allocation2 + $0x188] sm:$0xff]
    %v129 = vld [vmem:[#allocation2 + $0x190] sm:$0xff]
    %v130 = vld [vmem:[#allocation2 + $0x198] sm:$0xff]
    %v131 = vld [vmem:[#allocation2 + $0x1a0] sm:$0xff]
    %v132 = vld [vmem:[#allocation2 + $0x1a8] sm:$0xff]
    %v133 = vld [vmem:[#allocation2 + $0x1b0] sm:$0xff]
    %v134 = vld [vmem:[#allocation2 + $0x1b8] sm:$0xff]
    %v135 = vld [vmem:[#allocation2 + $0x1c0] sm:$0xff]
    %v136 = vld [vmem:[#allocation2 + $0x1c8] sm:$0xff]
    %v137 = vld [vmem:[#allocation2 + $0x1d0] sm:$0xff]
    %v138 = vld [vmem:[#allocation2 + $0x1d8] sm:$0xff]
    %v139 = vld [vmem:[#allocation2 + $0x1e0] sm:$0xff]
    %v140 = vld [vmem:[#allocation2 + $0x1e8] sm:$0xff]
    %v141 = vld [vmem:[#allocation2 + $0x1f0] sm:$0xff]
    %v142 = vld [vmem:[#allocation2 + $0x1f8] sm:$0xff]
    %v143 = vld [vmem:[%s1] sm:$0xff]
    %v144 = vld [vmem:[#allocation5] sm:$0xff]
    %v145 = vld [vmem:[#allocation5 + $0x8] sm:$0xff]
    %v146 = vld [vmem:[#allocation5 + $0x10] sm:$0xff]
    %v147 = vld [vmem:[#allocation5 + $0x18] sm:$0xff]
    %v148 = vld [vmem:[#allocation5 + $0x20] sm:$0xff]
    %v149 = vld [vmem:[#allocation5 + $0x28] sm:$0xff]
    %v150 = vld [vmem:[#allocation5 + $0x30] sm:$0xff]
    %v151 = vld [vmem:[#allocation5 + $0x38] sm:$0xff]
    %v152 = vld [vmem:[#allocation5 + $0x40] sm:$0xff]
    %v153 = vld [vmem:[#allocation5 + $0x48] sm:$0xff]
    %v154 = vld [vmem:[#allocation5 + $0x50] sm:$0xff]
    %v155 = vld [vmem:[#allocation5 + $0x58] sm:$0xff]
    %v156 = vld [vmem:[#allocation5 + $0x60] sm:$0xff]
    %v157 = vld [vmem:[#allocation5 + $0x68] sm:$0xff]
    %v158 = vld [vmem:[#allocation5 + $0x70] sm:$0xff]
    %v159 = vld [vmem:[#allocation5 + $0x78] sm:$0xff]
    %v160 = vld [vmem:[#allocation5 + $0x80] sm:$0xff]
    %v161 = vld [vmem:[#allocation5 + $0x88] sm:$0xff]
    %v162 = vld [vmem:[#allocation5 + $0x90] sm:$0xff]
    %v163 = vld [vmem:[#allocation5 + $0x98] sm:$0xff]
    %v164 = vld [vmem:[#allocation5 + $0xa0] sm:$0xff]
    %v165 = vld [vmem:[#allocation5 + $0xa8] sm:$0xff]
    %v166 = vld [vmem:[#allocation5 + $0xb0] sm:$0xff]
    %v167 = vld [vmem:[#allocation5 + $0xb8] sm:$0xff]
    %v168 = vld [vmem:[#allocation5 + $0xc0] sm:$0xff]
    %v169 = vld [vmem:[#allocation5 + $0xc8] sm:$0xff]
    %v170 = vld [vmem:[#allocation5 + $0xd0] sm:$0xff]
    %v171 = vld [vmem:[#allocation5 + $0xd8] sm:$0xff]
    %v172 = vld [vmem:[#allocation5 + $0xe0] sm:$0xff]
    %v173 = vld [vmem:[#allocation5 + $0xe8] sm:$0xff]
    %v174 = vld [vmem:[#allocation5 + $0xf0] sm:$0xff]
    %v175 = vld [vmem:[#allocation5 + $0xf8] sm:$0xff]
    %v176 = vld [vmem:[#allocation5 + $0x100] sm:$0xff]
    %v177 = vld [vmem:[#allocation5 + $0x108] sm:$0xff]
    %v178 = vld [vmem:[#allocation5 + $0x110] sm:$0xff]
    %v179 = vld [vmem:[#allocation5 + $0x118] sm:$0xff]
    %v180 = vld [vmem:[#allocation5 + $0x120] sm:$0xff]
    %v181 = vld [vmem:[#allocation5 + $0x128] sm:$0xff]
    %v182 = vld [vmem:[#allocation5 + $0x130] sm:$0xff]
    %v183 = vld [vmem:[#allocation5 + $0x138] sm:$0xff]
    %v184 = vld [vmem:[#allocation5 + $0x140] sm:$0xff]
    %v185 = vld [vmem:[#allocation5 + $0x148] sm:$0xff]
    %v186 = vld [vmem:[#allocation5 + $0x150] sm:$0xff]
    %v187 = vld [vmem:[#allocation5 + $0x158] sm:$0xff]
    %v188 = vld [vmem:[#allocation5 + $0x160] sm:$0xff]
    %v189 = vld [vmem:[#allocation5 + $0x168] sm:$0xff]
    %v190 = vld [vmem:[#allocation5 + $0x170] sm:$0xff]
    %v191 = vld [vmem:[#allocation5 + $0x178] sm:$0xff]
    %v192 = vld [vmem:[#allocation5 + $0x180] sm:$0xff]
    %v193 = vld [vmem:[#allocation5 + $0x188] sm:$0xff]
    %v194 = vld [vmem:[#allocation5 + $0x190] sm:$0xff]
    %v195 = vld [vmem:[#allocation5 + $0x198] sm:$0xff]
    %v196 = vld [vmem:[#allocation5 + $0x1a0] sm:$0xff]
    %v197 = vld [vmem:[#allocation5 + $0x1a8] sm:$0xff]
    %v198 = vld [vmem:[#allocation5 + $0x1b0] sm:$0xff]
    %v199 = vld [vmem:[#allocation5 + $0x1b8] sm:$0xff]
    %v200 = vld [vmem:[#allocation5 + $0x1c0] sm:$0xff]
    %v201 = vld [vmem:[#allocation5 + $0x1c8] sm:$0xff]
    %v202 = vld [vmem:[#allocation5 + $0x1d0] sm:$0xff]
    %v203 = vld [vmem:[#allocation5 + $0x1d8] sm:$0xff]
    %v204 = vld [vmem:[#allocation5 + $0x1e0] sm:$0xff]
    %v205 = vld [vmem:[#allocation5 + $0x1e8] sm:$0xff]
    %v206 = vld [vmem:[#allocation5 + $0x1f0] sm:$0xff]
    %v207 = vld [vmem:[#allocation5 + $0x1f8] sm:$0xff]
    %208 = vmatprep.subr.mxu0 %v205
    %209 = vmatpush1.msra.mxu0 %v204
    %210 = vmatprep.subr.mxu0 %v201
    %211 = vmatpush1.msra.mxu0 %v200
    %212 = vmatprep.subr.mxu0 %v197
    %213 = vmatpush1.msra.mxu0 %v196
    %214 = vmatprep.subr.mxu0 %v193
    %215 = vmatpush1.msra.mxu0 %v192
    %216 = vmatprep.subr.mxu0 %v189
    %217 = vmatpush1.msra.mxu0 %v188
    %218 = vmatprep.subr.mxu0 %v185
    %219 = vmatpush1.msra.mxu0 %v184
    %220 = vmatprep.subr.mxu0 %v181
    %221 = vmatpush1.msra.mxu0 %v180
    %222 = vmatprep.subr.mxu0 %v177
    %223 = vmatpush1.msra.mxu0 %v176
    %224 = vmatprep.subr.mxu0 %v173
    %225 = vmatpush1.msra.mxu0 %v172
    %226 = vmatprep.subr.mxu0 %v169
    %227 = vmatpush1.msra.mxu0 %v168
    %228 = vmatprep.subr.mxu0 %v165
    %229 = vmatpush1.msra.mxu0 %v164
    %230 = vmatprep.subr.mxu0 %v161
    %231 = vmatpush1.msra.mxu0 %v160
    %232 = vmatprep.subr.mxu0 %v157
    %233 = vmatpush1.msra.mxu0 %v156
    %234 = vmatprep.subr.mxu0 %v153
    %235 = vmatpush1.msra.mxu0 %v152
    %236 = vmatprep.subr.mxu0 %v149
    %237 = vmatpush1.msra.mxu0 %v148
    %238 = vmatprep.subr.mxu0 %v145
    %239 = vmatpush1.msra.mxu0 %v144
    %240 = vmatprep.subr.mxu0 0.0
    %241 = vmatpush2.msra.mxu0 0.0
    %242 = vmatprep.subr.mxu0 0.0
    %243 = vmatpush2.msra.mxu0 0.0
    %244 = vmatprep.subr.mxu0 0.0
    %245 = vmatpush2.msra.mxu0 0.0
    %246 = vmatprep.subr.mxu0 0.0
    %247 = vmatpush2.msra.mxu0 0.0
    %248 = vmatprep.subr.mxu0 0.0
    %249 = vmatpush2.msra.mxu0 0.0
    %250 = vmatprep.subr.mxu0 0.0
    %251 = vmatpush2.msra.mxu0 0.0
    %252 = vmatprep.subr.mxu0 0.0
    %253 = vmatpush2.msra.mxu0 0.0
    %254 = vmatprep.subr.mxu0 0.0
    %255 = vmatpush2.msra.mxu0 0.0
    %256 = vmatprep.subr.mxu0 0.0
    %257 = vmatpush2.msra.mxu0 0.0
    %258 = vmatprep.subr.mxu0 0.0
    %259 = vmatpush2.msra.mxu0 0.0
    %260 = vmatprep.subr.mxu0 0.0
    %261 = vmatpush2.msra.mxu0 0.0
    %262 = vmatprep.subr.mxu0 0.0
    %263 = vmatpush2.msra.mxu0 0.0
    %264 = vmatprep.subr.mxu0 0.0
    %265 = vmatpush2.msra.mxu0 0.0
    %266 = vmatprep.subr.mxu0 0.0
    %267 = vmatpush2.msra.mxu0 0.0
    %268 = vmatprep.subr.mxu0 0.0
    %269 = vmatpush2.msra.mxu0 0.0
    %270 = vmatprep.subr.mxu0 0.0
    %271 = vmatpush2.msra.mxu0 0.0
    %272 = vmatprep.mubr.f32.mxu0 0.0
    %273 = vmatmul.mubr.f32.gmra.mxu0 %v143
    %v274 = vpop.f32.mrf.mxu0
    %v275 = vadd.f32 0.0, %v274
    %v276 = vpop.f32.mrf.mxu0
    %v277 = vadd.f32 0.0, %v276
    %278 = vdwg.mxu0
    %279 = vmatprep.subr.mxu0 %v207
    %280 = vmatpush1.msra.mxu0 %v206
    %281 = vmatprep.subr.mxu0 %v203
    %282 = vmatpush1.msra.mxu0 %v202
    %283 = vmatprep.subr.mxu0 %v199
    %284 = vmatpush1.msra.mxu0 %v198
    %285 = vmatprep.subr.mxu0 %v195
    %286 = vmatpush1.msra.mxu0 %v194
    %287 = vmatprep.subr.mxu0 %v191
    %288 = vmatpush1.msra.mxu0 %v190
    %289 = vmatprep.subr.mxu0 %v187
    %290 = vmatpush1.msra.mxu0 %v186
    %291 = vmatprep.subr.mxu0 %v183
    %292 = vmatpush1.msra.mxu0 %v182
    %293 = vmatprep.subr.mxu0 %v179
    %294 = vmatpush1.msra.mxu0 %v178
    %295 = vmatprep.subr.mxu0 %v175
    %296 = vmatpush1.msra.mxu0 %v174
    %297 = vmatprep.subr.mxu0 %v171
    %298 = vmatpush1.msra.mxu0 %v170
    %299 = vmatprep.subr.mxu0 %v167
    %300 = vmatpush1.msra.mxu0 %v166
    %301 = vmatprep.subr.mxu0 %v163
    %302 = vmatpush1.msra.mxu0 %v162
    %303 = vmatprep.subr.mxu0 %v159
    %304 = vmatpush1.msra.mxu0 %v158
    %305 = vmatprep.subr.mxu0 %v155
    %306 = vmatpush1.msra.mxu0 %v154
    %307 = vmatprep.subr.mxu0 %v151
    %308 = vmatpush1.msra.mxu0 %v150
    %309 = vmatprep.subr.mxu0 %v147
    %310 = vmatpush1.msra.mxu0 %v146
    %311 = vmatprep.subr.mxu0 0.0
    %312 = vmatpush2.msra.mxu0 0.0
    %313 = vmatprep.subr.mxu0 0.0
    %314 = vmatpush2.msra.mxu0 0.0
    %315 = vmatprep.subr.mxu0 0.0
    %316 = vmatpush2.msra.mxu0 0.0
    %317 = vmatprep.subr.mxu0 0.0
    %318 = vmatpush2.msra.mxu0 0.0
    %319 = vmatprep.subr.mxu0 0.0
    %320 = vmatpush2.msra.mxu0 0.0
    %321 = vmatprep.subr.mxu0 0.0
    %322 = vmatpush2.msra.mxu0 0.0
    %323 = vmatprep.subr.mxu0 0.0
    %324 = vmatpush2.msra.mxu0 0.0
    %325 = vmatprep.subr.mxu0 0.0
    %326 = vmatpush2.msra.mxu0 0.0
    %327 = vmatprep.subr.mxu0 0.0
    %328 = vmatpush2.msra.mxu0 0.0
    %329 = vmatprep.subr.mxu0 0.0
    %330 = vmatpush2.msra.mxu0 0.0
    %331 = vmatprep.subr.mxu0 0.0
    %332 = vmatpush2.msra.mxu0 0.0
    %333 = vmatprep.subr.mxu0 0.0
    %334 = vmatpush2.msra.mxu0 0.0
    %335 = vmatprep.subr.mxu0 0.0
    %336 = vmatpush2.msra.mxu0 0.0
    %337 = vmatprep.subr.mxu0 0.0
    %338 = vmatpush2.msra.mxu0 0.0
    %339 = vmatprep.subr.mxu0 0.0
    %340 = vmatpush2.msra.mxu0 0.0
    %341 = vmatprep.subr.mxu0 0.0
    %342 = vmatpush2.msra.mxu0 0.0
    %343 = vmatprep.mubr.f32.mxu0 0.0
    %344 = vmatmul.mubr.f32.gmra.mxu0 %v143
    %v345 = vpop.f32.mrf.mxu0
    %v346 = vadd.f32 0.0, %v345
    %v347 = vpop.f32.mrf.mxu0
    %v348 = vadd.f32 0.0, %v347
    %349 = vdwg.mxu0
    %350 = vmatprep.subr.mxu0 %v140
    %351 = vmatpush1.msra.mxu0 %v139
    %352 = vmatprep.subr.mxu0 %v136
    %353 = vmatpush1.msra.mxu0 %v135
    %354 = vmatprep.subr.mxu0 %v132
    %355 = vmatpush1.msra.mxu0 %v131
    %356 = vmatprep.subr.mxu0 %v128
    %357 = vmatpush1.msra.mxu0 %v127
    %358 = vmatprep.subr.mxu0 %v124
    %359 = vmatpush1.msra.mxu0 %v123
    %360 = vmatprep.subr.mxu0 %v120
    %361 = vmatpush1.msra.mxu0 %v119
    %362 = vmatprep.subr.mxu0 %v116
    %363 = vmatpush1.msra.mxu0 %v115
    %364 = vmatprep.subr.mxu0 %v112
    %365 = vmatpush1.msra.mxu0 %v111
    %366 = vmatprep.subr.mxu0 %v108
    %367 = vmatpush1.msra.mxu0 %v107
    %368 = vmatprep.subr.mxu0 %v104
    %369 = vmatpush1.msra.mxu0 %v103
    %370 = vmatprep.subr.mxu0 %v100
    %371 = vmatpush1.msra.mxu0 %v99
    %372 = vmatprep.subr.mxu0 %v96
    %373 = vmatpush1.msra.mxu0 %v95
    %374 = vmatprep.subr.mxu0 %v92
    %375 = vmatpush1.msra.mxu0 %v91
    %376 = vmatprep.subr.mxu0 %v88
    %377 = vmatpush1.msra.mxu0 %v87
    %378 = vmatprep.subr.mxu0 %v84
    %379 = vmatpush1.msra.mxu0 %v83
    %380 = vmatprep.subr.mxu0 %v80
    %381 = vmatpush1.msra.mxu0 %v79
    %382 = vmatprep.subr.mxu0 0.0
    %383 = vmatpush2.msra.mxu0 0.0
    %384 = vmatprep.subr.mxu0 0.0
    %385 = vmatpush2.msra.mxu0 0.0
    %386 = vmatprep.subr.mxu0 0.0
    %387 = vmatpush2.msra.mxu0 0.0
    %388 = vmatprep.subr.mxu0 0.0
    %389 = vmatpush2.msra.mxu0 0.0
    %390 = vmatprep.subr.mxu0 0.0
    %391 = vmatpush2.msra.mxu0 0.0
    %392 = vmatprep.subr.mxu0 0.0
    %393 = vmatpush2.msra.mxu0 0.0
    %394 = vmatprep.subr.mxu0 0.0
    %395 = vmatpush2.msra.mxu0 0.0
    %396 = vmatprep.subr.mxu0 0.0
    %397 = vmatpush2.msra.mxu0 0.0
    %398 = vmatprep.subr.mxu0 0.0
    %399 = vmatpush2.msra.mxu0 0.0
    %400 = vmatprep.subr.mxu0 0.0
    %401 = vmatpush2.msra.mxu0 0.0
    %402 = vmatprep.subr.mxu0 0.0
    %403 = vmatpush2.msra.mxu0 0.0
    %404 = vmatprep.subr.mxu0 0.0
    %405 = vmatpush2.msra.mxu0 0.0
    %406 = vmatprep.subr.mxu0 0.0
    %407 = vmatpush2.msra.mxu0 0.0
    %408 = vmatprep.subr.mxu0 0.0
    %409 = vmatpush2.msra.mxu0 0.0
    %410 = vmatprep.subr.mxu0 0.0
    %411 = vmatpush2.msra.mxu0 0.0
    %412 = vmatprep.subr.mxu0 0.0
    %413 = vmatpush2.msra.mxu0 0.0
    %414 = vmatprep.mubr.f32.mxu0 0.0
    %415 = vmatmul.mubr.f32.gmra.mxu0 %v78
    %v416 = vpop.f32.mrf.mxu0
    %v417 = vadd.f32 %v275, %v416
    %v418 = vpop.f32.mrf.mxu0
    %v419 = vadd.f32 %v277, %v418
    %420 = vdwg.mxu0
    %421 = vmatprep.subr.mxu0 %v142
    %422 = vmatpush1.msra.mxu0 %v141
    %423 = vmatprep.subr.mxu0 %v138
    %424 = vmatpush1.msra.mxu0 %v137
    %425 = vmatprep.subr.mxu0 %v134
    %426 = vmatpush1.msra.mxu0 %v133
    %427 = vmatprep.subr.mxu0 %v130
    %428 = vmatpush1.msra.mxu0 %v129
    %429 = vmatprep.subr.mxu0 %v126
    %430 = vmatpush1.msra.mxu0 %v125
    %431 = vmatprep.subr.mxu0 %v122
    %432 = vmatpush1.msra.mxu0 %v121
    %433 = vmatprep.subr.mxu0 %v118
    %434 = vmatpush1.msra.mxu0 %v117
    %435 = vmatprep.subr.mxu0 %v114
    %436 = vmatpush1.msra.mxu0 %v113
    %437 = vmatprep.subr.mxu0 %v110
    %438 = vmatpush1.msra.mxu0 %v109
    %439 = vmatprep.subr.mxu0 %v106
    %440 = vmatpush1.msra.mxu0 %v105
    %441 = vmatprep.subr.mxu0 %v102
    %442 = vmatpush1.msra.mxu0 %v101
    %443 = vmatprep.subr.mxu0 %v98
    %444 = vmatpush1.msra.mxu0 %v97
    %445 = vmatprep.subr.mxu0 %v94
    %446 = vmatpush1.msra.mxu0 %v93
    %447 = vmatprep.subr.mxu0 %v90
    %448 = vmatpush1.msra.mxu0 %v89
    %449 = vmatprep.subr.mxu0 %v86
    %450 = vmatpush1.msra.mxu0 %v85
    %451 = vmatprep.subr.mxu0 %v82
    %452 = vmatpush1.msra.mxu0 %v81
    %453 = vmatprep.subr.mxu0 0.0
    %454 = vmatpush2.msra.mxu0 0.0
    %455 = vmatprep.subr.mxu0 0.0
    %456 = vmatpush2.msra.mxu0 0.0
    %457 = vmatprep.subr.mxu0 0.0
    %458 = vmatpush2.msra.mxu0 0.0
    %459 = vmatprep.subr.mxu0 0.0
    %460 = vmatpush2.msra.mxu0 0.0
    %461 = vmatprep.subr.mxu0 0.0
    %462 = vmatpush2.msra.mxu0 0.0
    %463 = vmatprep.subr.mxu0 0.0
    %464 = vmatpush2.msra.mxu0 0.0
    %465 = vmatprep.subr.mxu0 0.0
    %466 = vmatpush2.msra.mxu0 0.0
    %467 = vmatprep.subr.mxu0 0.0
    %468 = vmatpush2.msra.mxu0 0.0
    %469 = vmatprep.subr.mxu0 0.0
    %470 = vmatpush2.msra.mxu0 0.0
    %471 = vmatprep.subr.mxu0 0.0
    %472 = vmatpush2.msra.mxu0 0.0
    %473 = vmatprep.subr.mxu0 0.0
    %474 = vmatpush2.msra.mxu0 0.0
    %475 = vmatprep.subr.mxu0 0.0
    %476 = vmatpush2.msra.mxu0 0.0
    %477 = vmatprep.subr.mxu0 0.0
    %478 = vmatpush2.msra.mxu0 0.0
    %479 = vmatprep.subr.mxu0 0.0
    %480 = vmatpush2.msra.mxu0 0.0
    %481 = vmatprep.subr.mxu0 0.0
    %482 = vmatpush2.msra.mxu0 0.0
    %483 = vmatprep.subr.mxu0 0.0
    %484 = vmatpush2.msra.mxu0 0.0
    %485 = vmatprep.mubr.f32.mxu0 0.0
    %486 = vmatmul.mubr.f32.gmra.mxu0 %v78
    %v487 = vpop.f32.mrf.mxu0
    %v488 = vadd.f32 %v346, %v487
    %v489 = vpop.f32.mrf.mxu0
    %v490 = vadd.f32 %v348, %v489
    %491 = vdwg.mxu0
    %v492 = vld [vmem:[%s6] sm:$0xf]
    %v494 = vlaneseq
    %v495 = vshrl.u32 %v494, 7
    %v496 = vsub.s32 0, %v495
    %v497 = vrot.slane %v492, %v496
    %v498 = vlaneseq
    %v499 = vshrl.u32 %v498, 7
    %v500 = vsub.s32 1, %v499
    %v501 = vrot.slane %v492, %v500
    %v502 = vlaneseq
    %v503 = vshrl.u32 %v502, 7
    %v504 = vsub.s32 2, %v503
    %v505 = vrot.slane %v492, %v504
    %v506 = vlaneseq
    %v507 = vshrl.u32 %v506, 7
    %v508 = vsub.s32 3, %v507
    %v509 = vrot.slane %v492, %v508
    %v514 = vadd.f32 %v417, %v497
    %v515 = vadd.f32 %v419, %v501
    %v516 = vadd.f32 %v488, %v505
    %v517 = vadd.f32 %v490, %v509
    %v518 = vtanh.pop %v514
    %v519 = vtanh.pop %v515
    %v520 = vtanh.pop %v516
    %v521 = vtanh.pop %v517
    %v522 = vmul.f32 %v518, 0.5
    %v523 = vadd.f32 %v522, 0.5
    %v524 = vmul.f32 %v519, 0.5
    %v525 = vadd.f32 %v524, 0.5
    %v526 = vmul.f32 %v520, 0.5
    %v527 = vadd.f32 %v526, 0.5
    %v528 = vld [vmem:[#allocation7] sm:$0xff]
    %v529 = vld [vmem:[#allocation7 + $0x8] sm:$0xff]
    %v530 = vld [vmem:[#allocation7 + $0x10] sm:$0xff]
    %v531 = vld [vmem:[#allocation7 + $0x18] sm:$0xff]
    %v532 = vld [vmem:[#allocation7 + $0x20] sm:$0xff]
    %v533 = vld [vmem:[#allocation7 + $0x28] sm:$0xff]
    %v534 = vld [vmem:[#allocation7 + $0x30] sm:$0xff]
    %v535 = vld [vmem:[#allocation7 + $0x38] sm:$0xff]
    %v536 = vld [vmem:[#allocation7 + $0x40] sm:$0xff]
    %v537 = vld [vmem:[#allocation7 + $0x48] sm:$0xff]
    %v538 = vld [vmem:[#allocation7 + $0x50] sm:$0xff]
    %v539 = vld [vmem:[#allocation7 + $0x58] sm:$0xff]
    %v540 = vld [vmem:[#allocation7 + $0x60] sm:$0xff]
    %v541 = vld [vmem:[#allocation7 + $0x68] sm:$0xff]
    %v542 = vld [vmem:[#allocation7 + $0x70] sm:$0xff]
    %v543 = vld [vmem:[#allocation7 + $0x78] sm:$0xff]
    %v544 = vld [vmem:[%s8] sm:$0x1]
    %v546 = vlaneseq
    %v547 = vshrl.u32 %v546, 7
    %v548 = vsub.s32 0, %v547
    %v549 = vrot.slane %v544, %v548
    %551 = vmatprep.subr.mxu0 0.0
    %552 = vmatpush1.msra.mxu0 %v543
    %553 = vmatprep.subr.mxu0 0.0
    %554 = vmatpush1.msra.mxu0 %v542
    %555 = vmatprep.subr.mxu0 0.0
    %556 = vmatpush1.msra.mxu0 %v541
    %557 = vmatprep.subr.mxu0 0.0
    %558 = vmatpush1.msra.mxu0 %v540
    %559 = vmatprep.subr.mxu0 0.0
    %560 = vmatpush1.msra.mxu0 %v539
    %561 = vmatprep.subr.mxu0 0.0
    %562 = vmatpush1.msra.mxu0 %v538
    %563 = vmatprep.subr.mxu0 0.0
    %564 = vmatpush1.msra.mxu0 %v537
    %565 = vmatprep.subr.mxu0 0.0
    %566 = vmatpush1.msra.mxu0 %v536
    %567 = vmatprep.subr.mxu0 0.0
    %568 = vmatpush1.msra.mxu0 %v535
    %569 = vmatprep.subr.mxu0 0.0
    %570 = vmatpush1.msra.mxu0 %v534
    %571 = vmatprep.subr.mxu0 0.0
    %572 = vmatpush1.msra.mxu0 %v533
    %573 = vmatprep.subr.mxu0 0.0
    %574 = vmatpush1.msra.mxu0 %v532
    %575 = vmatprep.subr.mxu0 0.0
    %576 = vmatpush1.msra.mxu0 %v531
    %577 = vmatprep.subr.mxu0 0.0
    %578 = vmatpush1.msra.mxu0 %v530
    %579 = vmatprep.subr.mxu0 0.0
    %580 = vmatpush1.msra.mxu0 %v529
    %581 = vmatprep.subr.mxu0 0.0
    %582 = vmatpush1.msra.mxu0 %v528
    %583 = vmatprep.subr.mxu0 0.0
    %584 = vmatpush2.msra.mxu0 0.0
    %585 = vmatprep.subr.mxu0 0.0
    %586 = vmatpush2.msra.mxu0 0.0
    %587 = vmatprep.subr.mxu0 0.0
    %588 = vmatpush2.msra.mxu0 0.0
    %589 = vmatprep.subr.mxu0 0.0
    %590 = vmatpush2.msra.mxu0 0.0
    %591 = vmatprep.subr.mxu0 0.0
    %592 = vmatpush2.msra.mxu0 0.0
    %593 = vmatprep.subr.mxu0 0.0
    %594 = vmatpush2.msra.mxu0 0.0
    %595 = vmatprep.subr.mxu0 0.0
    %596 = vmatpush2.msra.mxu0 0.0
    %597 = vmatprep.subr.mxu0 0.0
    %598 = vmatpush2.msra.mxu0 0.0
    %599 = vmatprep.subr.mxu0 0.0
    %600 = vmatpush2.msra.mxu0 0.0
    %601 = vmatprep.subr.mxu0 0.0
    %602 = vmatpush2.msra.mxu0 0.0
    %603 = vmatprep.subr.mxu0 0.0
    %604 = vmatpush2.msra.mxu0 0.0
    %605 = vmatprep.subr.mxu0 0.0
    %606 = vmatpush2.msra.mxu0 0.0
    %607 = vmatprep.subr.mxu0 0.0
    %608 = vmatpush2.msra.mxu0 0.0
    %609 = vmatprep.subr.mxu0 0.0
    %610 = vmatpush2.msra.mxu0 0.0
    %611 = vmatprep.subr.mxu0 0.0
    %612 = vmatpush2.msra.mxu0 0.0
    %613 = vmatprep.subr.mxu0 0.0
    %614 = vmatpush2.msra.mxu0 0.0
    %615 = vmatprep.mubr.f32.mxu0 0.0
    %616 = vmatmul.mubr.f32.gmra.mxu0 %v77
    %v617 = vpop.f32.mrf.mxu0
    %v618 = vadd.f32 %v549, %v617
    %v619 = vpop.f32.mrf.mxu0
    %620 = vdwg.mxu0
    %v621 = vtanh.pop %v618
    %v622 = vld [vmem:[%s2] sm:$0xff]
    %v623 = vtanh.pop %v622
    %625 = vset.pattern.permute.xlu0 0
    %626 = vperm.xlu0 %625, %v623
    %v627 = vpop.permute.xlu0 %626
    %v629 = vmul.f32 %v621, %v627
    %v630 = vsub.f32 %v77, %v621
    %v631 = vadd.f32 %v630, %v629
    %v632 = vmul.f32 %v523, %v631
    %v633 = vmul.f32 %v525, %v521
    %v634 = vadd.f32 %v632, %v633
    %v635 = vtanh.pop %v634
    %v636 = vmul.f32 %v527, %v635
    %637 = vst [vmem:[#allocation8] sm:$0xff] %v636
    %638 = vst [vmem:[#allocation9] sm:$0xff] %v634
    // Predicated region
    $region50: #{tlstm_cell_forward.1} parent=1 // pred_check
      _
    $region51: #{tlstm_cell_forward.1} parent=1 // pred_check_branch
      %640 = sbr.rel (0) target = $region53
    $region52: #{tlstm_cell_forward.1} parent=1 // pred_region
      %s642 = ssub.s32 128, 128
      %643 = vsyncadd [#allocation4], %s642
      %s645 = sshll.u32 [#allocation8], 4
      %s646 = int_to_ptr.vmem [resolvable:$true] %s645
      %648 = dma.vmem_to_hbm [thread:$0]  %s646, 128, %s9, [#allocation4]
    $region53: #{tlstm_cell_forward.1} parent=1 // pred_fallthru
      _
    // Predicated region
    $region54: #{tlstm_cell_forward.1} parent=1 // pred_check
      _
    $region55: #{tlstm_cell_forward.1} parent=1 // pred_check_branch
      %650 = sbr.rel (0) target = $region57
    $region56: #{tlstm_cell_forward.1} parent=1 // pred_region
      %s652 = ssub.s32 128, 128
      %653 = vsyncadd [#allocation10], %s652
      %s655 = sshll.u32 [#allocation9], 4
      %s656 = int_to_ptr.vmem [resolvable:$true] %s655
      %658 = dma.vmem_to_hbm [thread:$0]  %s656, 128, %s10, [#allocation10]
    $region57: #{tlstm_cell_forward.1} parent=1 // pred_fallthru
      _
    // Predicated region
    $region58: #{tlstm_cell_forward.1} parent=1 // pred_check
      _
    $region59: #{tlstm_cell_forward.1} parent=1 // pred_check_branch
      %660 = sbr.rel (0) target = $region61
    $region60: #{tlstm_cell_forward.1} parent=1 // pred_region
      %661 = dma.done [#allocation4], 128
    $region61: #{tlstm_cell_forward.1} parent=1 // pred_fallthru
      _
    // Predicated region
    $region62: #{tlstm_cell_forward.1} parent=1 // pred_check
      _
    $region63: #{tlstm_cell_forward.1} parent=1 // pred_check_branch
      %663 = sbr.rel (0) target = $region65
    $region64: #{tlstm_cell_forward.1} parent=1 // pred_region
      %664 = dma.done [#allocation10], 128
    $region65: #{tlstm_cell_forward.1} parent=1 // pred_fallthru
      _
    %665 = vsyncpa [#allocation3], 1
    %666 = vsyncpa [#allocation6], 1
    %667 = vsyncpa [#allocation4], 1
    %668 = vsyncpa [#allocation10], 1

</llo_original>
